<compile_context>
chip_gen: v7x
topology: tpu7x:2x2x1
jax: 0.10.0
libtpu: 0.0.40
codegen_flags: <defaults>
</compile_context>

<pallas_src>
import jax
import jax.numpy as jnp
from jax.experimental import pallas as pl
from jax.experimental.pallas import tpu as pltpu


def dense_layer(x, scale1, shift1, w1, scale2, shift2, w2_taps, *, samples_per_block=None):
    """x: (N, C_in, L) f32.  Returns (N, C_in + G, L) f32."""
    N, C_in, L = x.shape
    H = w1.shape[0]
    G = w2_taps.shape[1]

    # Block policy: whole samples per block; >=2 blocks when N>=2 (feed both v7x TCs),
    # bigger (lane-denser) blocks as N grows to amortize per-grid-step overhead.
    if samples_per_block is None:
        samples_per_block = max(1, N // 2)
    if N % samples_per_block:
        samples_per_block = 1
    T = samples_per_block * L
    n_blocks = (N * L) // T

    # Wrapper-side prep (pure layout / algebraic folds, handled by XLA):
    x_slab = jnp.transpose(x, (1, 0, 2)).reshape(C_in, N * L)       # lane-dense slab
    w1_scaled = scale2 * w1                                          # fold BN2 scale into conv1 weight
    w2_flat = jnp.transpose(w2_taps, (1, 0, 2)).reshape(G, 3 * H)    # (G, 3H): [tap l-1 | l | l+1]

    def kernel(xs_ref, s1_ref, b1_ref, w1_ref, b2_ref, w2_ref, o_ref):
        xs = xs_ref[...]                                             # (C_in, T)

        # BN1 (folded affine) + ReLU
        h1 = jnp.maximum(xs * s1_ref[...] + b1_ref[...], 0.0)

        # conv1 (k=1) as channel matmul; BN2 scale already folded into w1 -> bias + ReLU
        y1 = jnp.dot(w1_ref[...], h1, preferred_element_type=jnp.float32)   # (H, T)
        h2 = jnp.maximum(y1 + b2_ref[...], 0.0)

        # k=3 taps: lane rolls on the XLU + zero-masks at sample boundaries (every L lanes)
        pos = jax.lax.broadcasted_iota(jnp.int32, (H, T), 1) % L
        h2_m1 = jnp.where(pos == 0, 0.0, pltpu.roll(h2, shift=1, axis=1))       # value at l-1
        h2_p1 = jnp.where(pos == L - 1, 0.0, pltpu.roll(h2, shift=T - 1, axis=1))  # value at l+1

        # Single fused conv2 matmul: (G, 3H) x (3H, T)
        stacked = jnp.concatenate([h2_m1, h2, h2_p1], axis=0)        # (3H, T)
        o_ref[...] = jnp.dot(w2_ref[...], stacked, preferred_element_type=jnp.float32)

    y2_slab = pl.pallas_call(
        kernel,
        out_shape=jax.ShapeDtypeStruct((G, N * L), jnp.float32),
        grid_spec=pltpu.PrefetchScalarGridSpec(
            num_scalar_prefetch=0,
            grid=(n_blocks,),
            in_specs=[
                pl.BlockSpec((C_in, T), lambda i: (0, i)),      # x slab tile
                pl.BlockSpec((C_in, 1), lambda i: (0, 0)),      # bn1 scale
                pl.BlockSpec((C_in, 1), lambda i: (0, 0)),      # bn1 shift
                pl.BlockSpec((H, C_in), lambda i: (0, 0)),      # conv1 weight (BN2 scale folded)
                pl.BlockSpec((H, 1), lambda i: (0, 0)),         # bn2 shift
                pl.BlockSpec((G, 3 * H), lambda i: (0, 0)),     # fused conv2 weight
            ],
            out_specs=pl.BlockSpec((G, T), lambda i: (0, i)),
        ),
        compiler_params=pltpu.CompilerParams(dimension_semantics=("parallel",)),
    )(x_slab, scale1, shift1, w1_scaled, shift2, w2_flat)

    # New growth channels back to (N, G, L); channel concat handled by XLA (no
    # pass-through copy of x inside the kernel).
    y2 = jnp.transpose(y2_slab.reshape(G, N, L), (1, 0, 2))
    return jnp.concatenate([x, y2], axis=1)


def _reference(x, scale1, shift1, w1, scale2, shift2, w2_taps):
    # Pure-JAX reference of the same forward (for correctness check).
    h1 = jnp.maximum(x * scale1[None, :, :] + shift1[None, :, :], 0.0)
    y1 = jnp.einsum("oc,ncl->nol", w1, h1)
    h2 = jnp.maximum(y1 * scale2[None, :, :] + shift2[None, :, :], 0.0)
    h2p = jnp.pad(h2, ((0, 0), (0, 0), (1, 1)))
    L = x.shape[-1]
    y2 = (jnp.einsum("gc,ncl->ngl", w2_taps[0], h2p[:, :, 0:L])
          + jnp.einsum("gc,ncl->ngl", w2_taps[1], h2p[:, :, 1:L + 1])
          + jnp.einsum("gc,ncl->ngl", w2_taps[2], h2p[:, :, 2:L + 2]))
    return jnp.concatenate([x, y2], axis=1)


if __name__ == "__main__":
    # Module hyperparameters
    input_channels = 16
    growth_rate = 8
    bn_size = 4
    hidden = bn_size * growth_rate        # 32
    N, L = 2, 128
    eps = 1e-5

    key = jax.random.PRNGKey(0)
    keys = jax.random.split(key, 11)

    x = jax.random.normal(keys[0], (N, input_channels, L), jnp.float32)

    # BatchNorm1d(input_channels) parameters (inference-mode, deterministic)
    gamma1 = 1.0 + 0.1 * jax.random.normal(keys[1], (input_channels,), jnp.float32)
    beta1 = 0.1 * jax.random.normal(keys[2], (input_channels,), jnp.float32)
    rmean1 = 0.1 * jax.random.normal(keys[3], (input_channels,), jnp.float32)
    rvar1 = jnp.abs(1.0 + 0.1 * jax.random.normal(keys[4], (input_channels,), jnp.float32))

    # Conv1d(input_channels, hidden, k=1, bias=False)
    w1 = (jax.random.normal(keys[5], (hidden, input_channels), jnp.float32)
          / jnp.sqrt(float(input_channels)))

    # BatchNorm1d(hidden) parameters
    gamma2 = 1.0 + 0.1 * jax.random.normal(keys[6], (hidden,), jnp.float32)
    beta2 = 0.1 * jax.random.normal(keys[7], (hidden,), jnp.float32)
    rmean2 = 0.1 * jax.random.normal(keys[8], (hidden,), jnp.float32)
    rvar2 = jnp.abs(1.0 + 0.1 * jax.random.normal(keys[9], (hidden,), jnp.float32))

    # Conv1d(hidden, growth_rate, k=3, padding=1, bias=False): (G, H, 3) -> taps (3, G, H)
    w2 = (jax.random.normal(keys[10], (growth_rate, hidden, 3), jnp.float32)
          / jnp.sqrt(float(3 * hidden)))
    w2_taps = jnp.transpose(w2, (2, 0, 1))            # (3, G, H)

    # Fold BN into per-channel scale/shift (kept as (C, 1) columns for the kernel)
    scale1 = (gamma1 / jnp.sqrt(rvar1 + eps))[:, None]
    shift1 = (beta1 - rmean1 * gamma1 / jnp.sqrt(rvar1 + eps))[:, None]
    scale2 = (gamma2 / jnp.sqrt(rvar2 + eps))[:, None]
    shift2 = (beta2 - rmean2 * gamma2 / jnp.sqrt(rvar2 + eps))[:, None]

    out = dense_layer(x, scale1, shift1, w1, scale2, shift2, w2_taps)
    out = jax.block_until_ready(out)

    ref = _reference(x, scale1, shift1, w1, scale2, shift2, w2_taps)
    assert out.shape == (N, input_channels + growth_rate, L), out.shape
    assert jnp.allclose(out, ref, atol=1e-4, rtol=1e-4), float(jnp.abs(out - ref).max())

    print("KERNEL_OK")
</pallas_src>

<mosaic_0001>
module attributes {stable_mosaic.version = 11 : i64} {
  func.func @kernel(%arg0: i32, %arg1: memref<16x128xf32, #tpu.memory_space<vmem>>, %arg2: memref<16x1xf32, #tpu.memory_space<vmem>>, %arg3: memref<16x1xf32, #tpu.memory_space<vmem>>, %arg4: memref<32x16xf32, #tpu.memory_space<vmem>>, %arg5: memref<32x1xf32, #tpu.memory_space<vmem>>, %arg6: memref<8x96xf32, #tpu.memory_space<vmem>>, %arg7: memref<8x128xf32, #tpu.memory_space<vmem>>) attributes {dimension_semantics = [#tpu.dimension_semantics<parallel>], iteration_bounds = array<i64: 2>, scalar_prefetch = 0 : i64, scratch_operands = 0 : i64, tpu.core_type = #tpu.core_type<tc>, window_params = [{transform_indices = @transform_0, window_bounds = array<i64: 16, 128>}, {pipeline_mode = #tpu.pipeline_mode<synchronous>, transform_indices = @transform_1, window_bounds = array<i64: 16, 1>}, {pipeline_mode = #tpu.pipeline_mode<synchronous>, transform_indices = @transform_2, window_bounds = array<i64: 16, 1>}, {pipeline_mode = #tpu.pipeline_mode<synchronous>, transform_indices = @transform_3, window_bounds = array<i64: 32, 16>}, {pipeline_mode = #tpu.pipeline_mode<synchronous>, transform_indices = @transform_4, window_bounds = array<i64: 32, 1>}, {pipeline_mode = #tpu.pipeline_mode<synchronous>, transform_indices = @transform_5, window_bounds = array<i64: 8, 96>}, {transform_indices = @transform_6, window_bounds = array<i64: 8, 128>}]} {
    %c0 = arith.constant 0 : index
    %c0_0 = arith.constant 0 : index
    %0 = vector.load %arg1[%c0, %c0_0] : memref<16x128xf32, #tpu.memory_space<vmem>>, vector<16x128xf32>
    %c0_1 = arith.constant 0 : index
    %c0_2 = arith.constant 0 : index
    %1 = vector.load %arg2[%c0_1, %c0_2] : memref<16x1xf32, #tpu.memory_space<vmem>>, vector<16x1xf32>
    %2 = vector.broadcast %1 : vector<16x1xf32> to vector<16x128xf32>
    %3 = arith.mulf %0, %2 : vector<16x128xf32>
    %c0_3 = arith.constant 0 : index
    %c0_4 = arith.constant 0 : index
    %4 = vector.load %arg3[%c0_3, %c0_4] : memref<16x1xf32, #tpu.memory_space<vmem>>, vector<16x1xf32>
    %5 = vector.broadcast %4 : vector<16x1xf32> to vector<16x128xf32>
    %6 = arith.addf %3, %5 : vector<16x128xf32>
    %cst = arith.constant 0.000000e+00 : f32
    %7 = vector.broadcast %cst : f32 to vector<16x128xf32>
    %8 = arith.maximumf %6, %7 : vector<16x128xf32>
    %c0_5 = arith.constant 0 : index
    %c0_6 = arith.constant 0 : index
    %9 = vector.load %arg4[%c0_5, %c0_6] : memref<32x16xf32, #tpu.memory_space<vmem>>, vector<32x16xf32>
    %cst_7 = arith.constant dense<0.000000e+00> : vector<32x128xf32>
    %10 = tpu.matmul %9, %8, %cst_7 {dimension_numbers = #tpu.dot_dimension_numbers<[1], [0], [0], [1], [0, 0, 1, 1], [], []>} : vector<32x16xf32>, vector<16x128xf32>, vector<32x128xf32> -> vector<32x128xf32>
    %c0_8 = arith.constant 0 : index
    %c0_9 = arith.constant 0 : index
    %11 = vector.load %arg5[%c0_8, %c0_9] : memref<32x1xf32, #tpu.memory_space<vmem>>, vector<32x1xf32>
    %12 = vector.broadcast %11 : vector<32x1xf32> to vector<32x128xf32>
    %13 = arith.addf %10, %12 : vector<32x128xf32>
    %cst_10 = arith.constant 0.000000e+00 : f32
    %14 = vector.broadcast %cst_10 : f32 to vector<32x128xf32>
    %15 = arith.maximumf %13, %14 : vector<32x128xf32>
    %16 = tpu.iota {dimensions = array<i32: 1>} : vector<32x128xi32>
    %c128_i32 = arith.constant 128 : i32
    %c0_i32 = arith.constant 0 : i32
    %17 = arith.cmpi eq, %c128_i32, %c0_i32 : i32
    %c1_i32 = arith.constant 1 : i32
    %18 = arith.select %17, %c1_i32, %c128_i32 : i32
    %19 = vector.broadcast %18 : i32 to vector<32x128xi32>
    %20 = arith.remsi %16, %19 : vector<32x128xi32>
    %c0_i32_11 = arith.constant 0 : i32
    %21 = vector.broadcast %c0_i32_11 : i32 to vector<32x128xi32>
    %22 = arith.cmpi ne, %20, %21 : vector<32x128xi32>
    %c0_i32_12 = arith.constant 0 : i32
    %23 = vector.broadcast %c0_i32_12 : i32 to vector<32x128xi32>
    %24 = arith.cmpi slt, %20, %23 : vector<32x128xi32>
    %c0_i32_13 = arith.constant 0 : i32
    %25 = arith.cmpi slt, %18, %c0_i32_13 : i32
    %26 = vector.broadcast %25 : i1 to vector<32x128xi1>
    %27 = vector.broadcast %26 : vector<32x128xi1> to vector<32x128xi1>
    %28 = arith.xori %24, %27 : vector<32x128xi1>
    %29 = arith.andi %28, %22 : vector<32x128xi1>
    %30 = vector.broadcast %18 : i32 to vector<32x128xi32>
    %31 = arith.addi %20, %30 : vector<32x128xi32>
    %32 = arith.select %29, %31, %20 : vector<32x128xi1>, vector<32x128xi32>
    %c0_i32_14 = arith.constant 0 : i32
    %33 = vector.broadcast %c0_i32_14 : i32 to vector<32x128xi32>
    %34 = arith.cmpi eq, %32, %33 : vector<32x128xi32>
    %c1_i32_15 = arith.constant 1 : i32
    %35 = tpu.dynamic_rotate %15 by %c1_i32_15 dim 1 : vector<32x128xf32>, i32 -> vector<32x128xf32>
    %cst_16 = arith.constant 0.000000e+00 : f32
    %36 = vector.broadcast %cst_16 : f32 to vector<32x128xf32>
    %37 = arith.select %34, %36, %35 : vector<32x128xi1>, vector<32x128xf32>
    %c127_i32 = arith.constant 127 : i32
    %38 = vector.broadcast %c127_i32 : i32 to vector<32x128xi32>
    %39 = arith.cmpi eq, %32, %38 : vector<32x128xi32>
    %c127_i32_17 = arith.constant 127 : i32
    %40 = tpu.dynamic_rotate %15 by %c127_i32_17 dim 1 : vector<32x128xf32>, i32 -> vector<32x128xf32>
    %cst_18 = arith.constant 0.000000e+00 : f32
    %41 = vector.broadcast %cst_18 : f32 to vector<32x128xf32>
    %42 = arith.select %39, %41, %40 : vector<32x128xi1>, vector<32x128xf32>
    %43 = tpu.concatenate %37, %15, %42 in 0 : vector<32x128xf32>, vector<32x128xf32>, vector<32x128xf32> -> vector<96x128xf32>
    %c0_19 = arith.constant 0 : index
    %c0_20 = arith.constant 0 : index
    %44 = vector.load %arg6[%c0_19, %c0_20] : memref<8x96xf32, #tpu.memory_space<vmem>>, vector<8x96xf32>
    %cst_21 = arith.constant dense<0.000000e+00> : vector<8x128xf32>
    %45 = tpu.matmul %44, %43, %cst_21 {dimension_numbers = #tpu.dot_dimension_numbers<[1], [0], [0], [1], [0, 0, 1, 1], [], []>} : vector<8x96xf32>, vector<96x128xf32>, vector<8x128xf32> -> vector<8x128xf32>
    %c0_22 = arith.constant 0 : index
    %c0_23 = arith.constant 0 : index
    %46 = vector.load %arg7[%c0_22, %c0_23] : memref<8x128xf32, #tpu.memory_space<vmem>>, vector<8x128xf32>
    tpu.vector_store %arg7[%c0_22, %c0_23], %45 {strides = array<i32>} : memref<8x128xf32, #tpu.memory_space<vmem>>, vector<8x128xf32>,
    return
  }
  func.func @transform_0(%arg0: i32) -> (i32, i32) {
    %c0_i32 = arith.constant 0 : i32
    %c0_i32_0 = arith.constant 0 : i32
    return %c0_i32, %arg0 : i32, i32
  }
  func.func @transform_1(%arg0: i32) -> (i32, i32) {
    %c0_i32 = arith.constant 0 : i32
    %c0_i32_0 = arith.constant 0 : i32
    %c0_i32_1 = arith.constant 0 : i32
    return %c0_i32, %c0_i32_0 : i32, i32
  }
  func.func @transform_2(%arg0: i32) -> (i32, i32) {
    %c0_i32 = arith.constant 0 : i32
    %c0_i32_0 = arith.constant 0 : i32
    %c0_i32_1 = arith.constant 0 : i32
    return %c0_i32, %c0_i32_0 : i32, i32
  }
  func.func @transform_3(%arg0: i32) -> (i32, i32) {
    %c0_i32 = arith.constant 0 : i32
    %c0_i32_0 = arith.constant 0 : i32
    %c0_i32_1 = arith.constant 0 : i32
    return %c0_i32, %c0_i32_0 : i32, i32
  }
  func.func @transform_4(%arg0: i32) -> (i32, i32) {
    %c0_i32 = arith.constant 0 : i32
    %c0_i32_0 = arith.constant 0 : i32
    %c0_i32_1 = arith.constant 0 : i32
    return %c0_i32, %c0_i32_0 : i32, i32
  }
  func.func @transform_5(%arg0: i32) -> (i32, i32) {
    %c0_i32 = arith.constant 0 : i32
    %c0_i32_0 = arith.constant 0 : i32
    %c0_i32_1 = arith.constant 0 : i32
    return %c0_i32, %c0_i32_0 : i32, i32
  }
  func.func @transform_6(%arg0: i32) -> (i32, i32) {
    %c0_i32 = arith.constant 0 : i32
    %c0_i32_0 = arith.constant 0 : i32
    return %c0_i32, %arg0 : i32, i32
  }
}

</mosaic_0001>

<llo_original>
// kernel: tpu_custom_call.1
$region0: #{tpu_custom_call.1}
  #allocation0 [shape = 'u32[]', space=smem, size = 0x4, offset = 0x4, fixed_abs, tag = 'smem constant byte address 0x4 - core index']
  #allocation1 [shape = 'u32[144,128]{1,0:T(1,128)}', space=vmem, size = 0x12000, scoped, tag = 'internal scratch']
  %s0 = inlined_call_operand.vmem [shape: f32[16,256], index: 0, kind: input, shape index: {}]
  %s1 = inlined_call_operand.vmem [shape: f32[16,1], index: 1, kind: input, shape index: {}]
  %s2 = inlined_call_operand.vmem [shape: f32[16,1], index: 2, kind: input, shape index: {}]
  %s3 = inlined_call_operand.vmem [shape: f32[32,16], index: 3, kind: input, shape index: {}]
  %s4 = inlined_call_operand.vmem [shape: f32[32,1], index: 4, kind: input, shape index: {}]
  %s5 = inlined_call_operand.vmem [shape: f32[8,96], index: 5, kind: input, shape index: {}]
  %s6 = inlined_call_operand.hbm [shape: f32[8,256], index: 6, kind: output, shape index: {}]
  %s7 = sld [smem:[#allocation0]]
  $region95: #{tpu_custom_call.1} parent=0
    _
  %s9 = ssub.s32 1, %s7
  %s10 = scalar_select 0, %s9, %s7
  $region1: #{tpu_custom_call.1} parent=0
    #allocation2 [shape = 'u8[16384]{0}', space=vmem, size = 0x4000, scoped, tag = 'input window, operand 0']
    #allocation3 [shape = 'u8[8192]{0}', space=vmem, size = 0x2000, scoped, tag = 'output window, operand 0']
    #allocation4 [shape = 's32[2]{0}', space=sflag, size = 0x8, scoped, tag = 'scoped memory for tpu_custom_call.1']
    %11 = vsyncpa [#allocation4], 0
    %s12 = scalar_lea.sflag [#allocation4], 1
    %13 = vsyncpa %s12, 0
    loop: start=0, step=1, limit=4
    $region2: #{tpu_custom_call.1} parent=1 // loop_pre_header
      _
    $region3: #{tpu_custom_call.1} parent=1 // loop_header
      %s15 = sphi 0, %s19
      %p16 = scmp.ge.s32.totalorder %s15, 4
      %s25 = sphi 0, %s27
      %s28 = sphi 0, %s25
      %s29 = sphi 0, %s28
      %s45 = sphi 0, %s29
      %s49 = sphi 0, %s49
      %s51 = sphi 0, %s49
      %s52 = sphi 0, %s51
      %s66 = sphi 0, %s52
      %s70 = sphi 0, %s70
      %s72 = sphi 0, %s70
      %s73 = sphi 0, %s72
      %s87 = sphi 0, %s73
      %s91 = sphi 0, %s91
      %s93 = sphi 0, %s91
      %s94 = sphi 0, %s93
      %s108 = sphi 0, %s94
      %s112 = sphi 0, %s112
      %s114 = sphi 0, %s112
      %s115 = sphi 0, %s114
      %s129 = sphi 0, %s115
      %s133 = sphi 0, %s133
      %s135 = sphi 0, %s133
      %s136 = sphi 0, %s135
      %s150 = sphi 0, %s136
      %s156 = sphi 0, %s158
      %s159 = sphi 0, %s156
      %s160 = sphi 0, %s159
      %s176 = sphi 0, %s160
    $region4: #{tpu_custom_call.1} parent=1 // loop_header_branch
      %18 = sbr.rel (%p16) target = $region8
    $region5: #{tpu_custom_call.1} parent=1 // loop_body
      %s20 = ssub.s32 %s15, 1
      %s21 = ssub.s32 %s15, 2
      %s22 = sadd.s32 %s15, 1
      %s23 = ssub.s32 %s15, %s22
      %p24 = scmp.eq.s32.totalorder %s23, 0
      %s26 = sadd.s32 %s25, 1
      %s27 = scalar_select %p24, %s25, %s26
      %p30 = pneg %p24
      %p31 = scmp.eq.s32.totalorder %s15, 1
      %p32 = por %p30, %p31
      %p33 = scmp.ne.s32.totalorder %s25, %s28
      %p34 = scmp.eq.s32.totalorder %s15, 0
      %p35 = por %p33, %p34
      %p36 = scmp.ne.s32.totalorder %s25, %s28
      %p37 = scmp.eq.s32.totalorder %s20, 1
      %p38 = por %p36, %p37
      %p39 = scmp.ne.s32.totalorder %s28, %s29
      %p40 = scmp.eq.s32.totalorder %s20, 0
      %p41 = por %p39, %p40
      %p42 = scmp.ne.s32.totalorder %s28, %s29
      %p43 = scmp.eq.s32.totalorder %s21, 1
      %p44 = por %p42, %p43
      %p46 = scmp.ne.s32.totalorder %s29, %s45
      %p47 = scmp.eq.s32.totalorder %s21, 0
      %p48 = por %p46, %p47
      %s50 = sadd.s32 %s49, 1
      %p53 = scmp.eq.s32.totalorder %s15, 1
      %p54 = scmp.ne.s32.totalorder %s49, %s51
      %p55 = scmp.eq.s32.totalorder %s15, 0
      %p56 = por %p54, %p55
      %p57 = scmp.ne.s32.totalorder %s49, %s51
      %p58 = scmp.eq.s32.totalorder %s20, 1
      %p59 = por %p57, %p58
      %p60 = scmp.ne.s32.totalorder %s51, %s52
      %p61 = scmp.eq.s32.totalorder %s20, 0
      %p62 = por %p60, %p61
      %p63 = scmp.ne.s32.totalorder %s51, %s52
      %p64 = scmp.eq.s32.totalorder %s21, 1
      %p65 = por %p63, %p64
      %p67 = scmp.ne.s32.totalorder %s52, %s66
      %p68 = scmp.eq.s32.totalorder %s21, 0
      %p69 = por %p67, %p68
      %s71 = sadd.s32 %s70, 1
      %p74 = scmp.eq.s32.totalorder %s15, 1
      %p75 = scmp.ne.s32.totalorder %s70, %s72
      %p76 = scmp.eq.s32.totalorder %s15, 0
      %p77 = por %p75, %p76
      %p78 = scmp.ne.s32.totalorder %s70, %s72
      %p79 = scmp.eq.s32.totalorder %s20, 1
      %p80 = por %p78, %p79
      %p81 = scmp.ne.s32.totalorder %s72, %s73
      %p82 = scmp.eq.s32.totalorder %s20, 0
      %p83 = por %p81, %p82
      %p84 = scmp.ne.s32.totalorder %s72, %s73
      %p85 = scmp.eq.s32.totalorder %s21, 1
      %p86 = por %p84, %p85
      %p88 = scmp.ne.s32.totalorder %s73, %s87
      %p89 = scmp.eq.s32.totalorder %s21, 0
      %p90 = por %p88, %p89
      %s92 = sadd.s32 %s91, 1
      %p95 = scmp.eq.s32.totalorder %s15, 1
      %p96 = scmp.ne.s32.totalorder %s91, %s93
      %p97 = scmp.eq.s32.totalorder %s15, 0
      %p98 = por %p96, %p97
      %p99 = scmp.ne.s32.totalorder %s91, %s93
      %p100 = scmp.eq.s32.totalorder %s20, 1
      %p101 = por %p99, %p100
      %p102 = scmp.ne.s32.totalorder %s93, %s94
      %p103 = scmp.eq.s32.totalorder %s20, 0
      %p104 = por %p102, %p103
      %p105 = scmp.ne.s32.totalorder %s93, %s94
      %p106 = scmp.eq.s32.totalorder %s21, 1
      %p107 = por %p105, %p106
      %p109 = scmp.ne.s32.totalorder %s94, %s108
      %p110 = scmp.eq.s32.totalorder %s21, 0
      %p111 = por %p109, %p110
      %s113 = sadd.s32 %s112, 1
      %p116 = scmp.eq.s32.totalorder %s15, 1
      %p117 = scmp.ne.s32.totalorder %s112, %s114
      %p118 = scmp.eq.s32.totalorder %s15, 0
      %p119 = por %p117, %p118
      %p120 = scmp.ne.s32.totalorder %s112, %s114
      %p121 = scmp.eq.s32.totalorder %s20, 1
      %p122 = por %p120, %p121
      %p123 = scmp.ne.s32.totalorder %s114, %s115
      %p124 = scmp.eq.s32.totalorder %s20, 0
      %p125 = por %p123, %p124
      %p126 = scmp.ne.s32.totalorder %s114, %s115
      %p127 = scmp.eq.s32.totalorder %s21, 1
      %p128 = por %p126, %p127
      %p130 = scmp.ne.s32.totalorder %s115, %s129
      %p131 = scmp.eq.s32.totalorder %s21, 0
      %p132 = por %p130, %p131
      %s134 = sadd.s32 %s133, 1
      %p137 = scmp.eq.s32.totalorder %s15, 1
      %p138 = scmp.ne.s32.totalorder %s133, %s135
      %p139 = scmp.eq.s32.totalorder %s15, 0
      %p140 = por %p138, %p139
      %p141 = scmp.ne.s32.totalorder %s133, %s135
      %p142 = scmp.eq.s32.totalorder %s20, 1
      %p143 = por %p141, %p142
      %p144 = scmp.ne.s32.totalorder %s135, %s136
      %p145 = scmp.eq.s32.totalorder %s20, 0
      %p146 = por %p144, %p145
      %p147 = scmp.ne.s32.totalorder %s135, %s136
      %p148 = scmp.eq.s32.totalorder %s21, 1
      %p149 = por %p147, %p148
      %p151 = scmp.ne.s32.totalorder %s136, %s150
      %p152 = scmp.eq.s32.totalorder %s21, 0
      %p153 = por %p151, %p152
      %s154 = ssub.s32 %s15, %s22
      %p155 = scmp.eq.s32.totalorder %s154, 0
      %s157 = sadd.s32 %s156, 1
      %s158 = scalar_select %p155, %s156, %s157
      %p161 = pneg %p155
      %p162 = scmp.eq.s32.totalorder %s15, 1
      %p163 = por %p161, %p162
      %p164 = scmp.ne.s32.totalorder %s156, %s159
      %p165 = scmp.eq.s32.totalorder %s15, 0
      %p166 = por %p164, %p165
      %p167 = scmp.ne.s32.totalorder %s156, %s159
      %p168 = scmp.eq.s32.totalorder %s20, 1
      %p169 = por %p167, %p168
      %p170 = scmp.ne.s32.totalorder %s159, %s160
      %p171 = scmp.eq.s32.totalorder %s20, 0
      %p172 = por %p170, %p171
      %p173 = scmp.ne.s32.totalorder %s159, %s160
      %p174 = scmp.eq.s32.totalorder %s21, 1
      %p175 = por %p173, %p174
      %p177 = scmp.ne.s32.totalorder %s160, %s176
      %p178 = scmp.eq.s32.totalorder %s21, 0
      %p179 = por %p177, %p178
      %p180 = scmp.le.s32.totalorder 1, %s15
      %p181 = scmp.lt.s32.totalorder %s15, 3
      %p182 = pnand %p180, %p181
      %p183 = pneg %p182
      // Predicated region
      $region9: #{tpu_custom_call.1} parent=5 // pred_check
        _
      $region10: #{tpu_custom_call.1} parent=5 // pred_check_branch
        %185 = sbr.rel (%p182) target = $region12
      $region11: #{tpu_custom_call.1} parent=5 // pred_region
        %s186 = ssub.s32 %s15, 1
        // Predicated region
        $region13: #{tpu_custom_call.1} parent=11 // pred_check
          %p187 = pneg %p62
        $region14: #{tpu_custom_call.1} parent=11 // pred_check_branch
          %189 = sbr.rel (%p187) target = $region16
        $region15: #{tpu_custom_call.1} parent=11 // pred_region
          _
        $region16: #{tpu_custom_call.1} parent=11 // pred_fallthru
          _
        // Predicated region
        $region17: #{tpu_custom_call.1} parent=11 // pred_check
          %p190 = pneg %p83
        $region18: #{tpu_custom_call.1} parent=11 // pred_check_branch
          %192 = sbr.rel (%p190) target = $region20
        $region19: #{tpu_custom_call.1} parent=11 // pred_region
          _
        $region20: #{tpu_custom_call.1} parent=11 // pred_fallthru
          _
        // Predicated region
        $region21: #{tpu_custom_call.1} parent=11 // pred_check
          %p193 = pneg %p104
        $region22: #{tpu_custom_call.1} parent=11 // pred_check_branch
          %195 = sbr.rel (%p193) target = $region24
        $region23: #{tpu_custom_call.1} parent=11 // pred_region
          _
        $region24: #{tpu_custom_call.1} parent=11 // pred_fallthru
          _
        // Predicated region
        $region25: #{tpu_custom_call.1} parent=11 // pred_check
          %p196 = pneg %p125
        $region26: #{tpu_custom_call.1} parent=11 // pred_check_branch
          %198 = sbr.rel (%p196) target = $region28
        $region27: #{tpu_custom_call.1} parent=11 // pred_region
          _
        $region28: #{tpu_custom_call.1} parent=11 // pred_fallthru
          _
        // Predicated region
        $region29: #{tpu_custom_call.1} parent=11 // pred_check
          %p199 = pneg %p146
        $region30: #{tpu_custom_call.1} parent=11 // pred_check_branch
          %201 = sbr.rel (%p199) target = $region32
        $region31: #{tpu_custom_call.1} parent=11 // pred_region
          _
        $region32: #{tpu_custom_call.1} parent=11 // pred_fallthru
          _
      $region12: #{tpu_custom_call.1} parent=5 // pred_fallthru
        _
      %p202 = scmp.lt.s32.totalorder %s15, 2
      // Predicated region
      $region33: #{tpu_custom_call.1} parent=5 // pred_check
        %p203 = pneg %p202
      $region34: #{tpu_custom_call.1} parent=5 // pred_check_branch
        %205 = sbr.rel (%p203) target = $region36
      $region35: #{tpu_custom_call.1} parent=5 // pred_region
        // Predicated region
        $region37: #{tpu_custom_call.1} parent=35 // pred_check
          %p206 = pneg %p35
        $region38: #{tpu_custom_call.1} parent=35 // pred_check_branch
          %208 = sbr.rel (%p206) target = $region40
        $region39: #{tpu_custom_call.1} parent=35 // pred_region
          %s209 = sand.u32 %s25, 1
          %s210 = sand.u32 %s25, 1
          %s211 = smul.addr %s210, 16
          %s212 = scalar_lea.vmem [#allocation2], %s211
          %s213 = smul.addr %s15, 8
          %s214 = scalar_lea.vmem %s0, %s213
          // Predicated region
          $region41: #{tpu_custom_call.1} parent=39 // pred_check
            _
          $region42: #{tpu_custom_call.1} parent=39 // pred_check_branch
            %216 = sbr.rel (0) target = $region44
          $region43: #{tpu_custom_call.1} parent=39 // pred_region
            // Predicated region
            $region45: #{tpu_custom_call.1} parent=43 // pred_check
              _
            $region46: #{tpu_custom_call.1} parent=43 // pred_check_branch
              %218 = sbr.rel (0) target = $region48
            $region47: #{tpu_custom_call.1} parent=43 // pred_region
              // Predicated region
              $region60: #{tpu_custom_call.1} parent=47 // pred_check
                _
              $region61: #{tpu_custom_call.1} parent=47 // pred_check_branch
                %235 = sbr.rel (0) target = $region63
              $region62: #{tpu_custom_call.1} parent=47 // pred_region
                loop: start=0, step=1, limit=1
                $region64: #{tpu_custom_call.1} parent=62 // loop_pre_header
                  _
                $region65: #{tpu_custom_call.1} parent=62 // loop_header
                  %s237 = sphi 0, %s241
                  %p238 = scmp.ge.s32.totalorder %s237, 1
                  %s242 = sphi %s214, %s214
                  %s243 = sphi %s212, %s212
                $region66: #{tpu_custom_call.1} parent=62 // loop_header_branch
                  %240 = sbr.rel (%p238) target = $region70
                $region67: #{tpu_custom_call.1} parent=62 // loop_body
                  %v244 = vld [vmem:[%s242] sm:$0xff]
                  %245 = vst [vmem:[%s243] sm:$0xff] %v244
                  %v246 = vld [vmem:[%s242 + $0x10] sm:$0xff]
                  %247 = vst [vmem:[%s243 + $0x8] sm:$0xff] %v246
                $region68: #{tpu_custom_call.1} parent=62 // loop_footer
                  %s241 = sadd.s32 1, %s237
                $region69: #{tpu_custom_call.1} parent=62 // loop_footer_branch
                  %236 = sbr.rel target = $region65
                $region70: #{tpu_custom_call.1} parent=62 // loop_exit
                  _
              $region63: #{tpu_custom_call.1} parent=47 // pred_fallthru
                _
              // Predicated region
              $region71: #{tpu_custom_call.1} parent=47 // pred_check
                _
              $region72: #{tpu_custom_call.1} parent=47 // pred_check_branch
                %249 = sbr.rel target = $region74
              $region73: #{tpu_custom_call.1} parent=47 // pred_region
                _
              $region74: #{tpu_custom_call.1} parent=47 // pred_fallthru
                _
            $region48: #{tpu_custom_call.1} parent=43 // pred_fallthru
              _
            // Predicated region
            $region49: #{tpu_custom_call.1} parent=43 // pred_check
              _
            $region50: #{tpu_custom_call.1} parent=43 // pred_check_branch
              %220 = sbr.rel target = $region52
            $region51: #{tpu_custom_call.1} parent=43 // pred_region
              loop: start=0, step=1, limit=1
              $region53: #{tpu_custom_call.1} parent=51 // loop_pre_header
                _
              $region54: #{tpu_custom_call.1} parent=51 // loop_header
                %s223 = sphi 0, %s227
                %p224 = scmp.ge.s32.totalorder %s223, 1
                %s228 = sphi %s214, %s214
                %s229 = sphi %s212, %s212
              $region55: #{tpu_custom_call.1} parent=51 // loop_header_branch
                %226 = sbr.rel (%p224) target = $region59
              $region56: #{tpu_custom_call.1} parent=51 // loop_body
                %v230 = vld [vmem:[%s228] sm:$0xff]
                %231 = vst [vmem:[%s229] sm:$0xff] %v230
                %v232 = vld [vmem:[%s228 + $0x10] sm:$0xff]
                %233 = vst [vmem:[%s229 + $0x8] sm:$0xff] %v232
              $region57: #{tpu_custom_call.1} parent=51 // loop_footer
                %s227 = sadd.s32 1, %s223
              $region58: #{tpu_custom_call.1} parent=51 // loop_footer_branch
                %222 = sbr.rel target = $region54
              $region59: #{tpu_custom_call.1} parent=51 // loop_exit
                _
            $region52: #{tpu_custom_call.1} parent=43 // pred_fallthru
              _
          $region44: #{tpu_custom_call.1} parent=39 // pred_fallthru
            _
          %250 = vnop
        $region40: #{tpu_custom_call.1} parent=35 // pred_fallthru
          _
      $region36: #{tpu_custom_call.1} parent=5 // pred_fallthru
        _
      %p251 = scmp.le.s32.totalorder 1, %s15
      %p252 = scmp.lt.s32.totalorder %s15, 3
      %p253 = pnand %p251, %p252
      %p254 = pneg %p253
      // Predicated region
      $region75: #{tpu_custom_call.1} parent=5 // pred_check
        _
      $region76: #{tpu_custom_call.1} parent=5 // pred_check_branch
        %256 = sbr.rel (%p253) target = $region78
      $region77: #{tpu_custom_call.1} parent=5 // pred_region
        %s257 = ssub.s32 %s15, 1
        %s258 = sand.u32 %s28, 1
        %s259 = sand.u32 %s28, 1
        %s260 = smul.addr %s259, 16
        %s261 = scalar_lea.vmem [#allocation2], %s260
        // Predicated region
        $region79: #{tpu_custom_call.1} parent=77 // pred_check
          %p262 = pneg %p41
        $region80: #{tpu_custom_call.1} parent=77 // pred_check_branch
          %264 = sbr.rel (%p262) target = $region82
        $region81: #{tpu_custom_call.1} parent=77 // pred_region
          _
        $region82: #{tpu_custom_call.1} parent=77 // pred_fallthru
          _
        %s265 = sand.u32 %s28, 1
        %s266 = sand.u32 %s28, 1
        %s267 = smul.addr %s266, 16
        %s268 = scalar_lea.vmem [#allocation2], %s267
        %p269 = pneg %p41
        %p270 = pneg %p38
        %p271 = pneg %p62
        %p272 = pneg %p59
        %p273 = pneg %p83
        %p274 = pneg %p80
        %p275 = pneg %p104
        %p276 = pneg %p101
        %p277 = pneg %p125
        %p278 = pneg %p122
        %p279 = pneg %p146
        %p280 = pneg %p143
        %p281 = pneg %p172
        %p282 = pneg %p169
        %s283 = sand.u32 %s159, 1
        %s284 = scalar_lea.sflag [#allocation4], %s283
        %s285 = sand.u32 %s159, 1
        %s286 = smul.addr %s285, 8
        %s287 = scalar_lea.vmem [#allocation3], %s286
        %v288 = vld [vmem:[%s261] sm:$0xff]
        %v289 = vld [vmem:[%s261 + $0x8] sm:$0xff]
        %v290 = vld [vmem:[%s1] sm:$0xff]
        %v291 = vld [vmem:[%s1 + $0x8] sm:$0xff]
        %293 = vset.pattern.permute.xlu0 0
        %294 = vperm.xlu0 %293, %v290
        %v295 = vpop.permute.xlu0 %294
        %298 = vset.pattern.permute.xlu0 0
        %299 = vperm.xlu0 %298, %v291
        %v300 = vpop.permute.xlu0 %299
        %v302 = vmul.f32 %v288, %v295
        %v303 = vmul.f32 %v289, %v300
        %v304 = vld [vmem:[%s2] sm:$0xff]
        %v305 = vld [vmem:[%s2 + $0x8] sm:$0xff]
        %307 = vset.pattern.permute.xlu0 0
        %308 = vperm.xlu0 %307, %v304
        %v309 = vpop.permute.xlu0 %308
        %312 = vset.pattern.permute.xlu0 0
        %313 = vperm.xlu0 %312, %v305
        %v314 = vpop.permute.xlu0 %313
        %v316 = vadd.f32 %v302, %v309
        %v317 = vadd.f32 %v303, %v314
        %v318 = vmax.f32 %v316, 0.0
        %v319 = vmax.f32 %v317, 0.0
        %v320 = vld [vmem:[%s3] sm:$0xff]
        %v321 = vld [vmem:[%s3 + $0x8] sm:$0xff]
        %v322 = vld [vmem:[%s3 + $0x10] sm:$0xff]
        %v323 = vld [vmem:[%s3 + $0x18] sm:$0xff]
        %v324 = vld [vmem:[%s4] sm:$0xff]
        %v325 = vld [vmem:[%s4 + $0x8] sm:$0xff]
        %v326 = vld [vmem:[%s4 + $0x10] sm:$0xff]
        %v327 = vld [vmem:[%s4 + $0x18] sm:$0xff]
        %329 = vset.pattern.permute.xlu0 0
        %330 = vperm.xlu0 %329, %v324
        %v331 = vpop.permute.xlu0 %330
        %334 = vset.pattern.permute.xlu0 0
        %335 = vperm.xlu0 %334, %v325
        %v336 = vpop.permute.xlu0 %335
        %339 = vset.pattern.permute.xlu0 0
        %340 = vperm.xlu0 %339, %v326
        %v341 = vpop.permute.xlu0 %340
        %344 = vset.pattern.permute.xlu0 0
        %345 = vperm.xlu0 %344, %v327
        %v346 = vpop.permute.xlu0 %345
        %vm348 = vcmask 130048
        %v350 = vsel %vm348, %v320, 0
        %v353 = vsel %vm348, %v321, 0
        %v356 = vsel %vm348, %v322, 0
        %v359 = vsel %vm348, %v323, 0
        %361 = vmatprep.subr.mxu0 0.0
        %362 = vmatpush1.msra.mxu0 %v318
        %363 = vmatprep.subr.mxu0 0.0
        %364 = vmatpush1.msra.mxu0 %v319
        %365 = vmatprep.subr.mxu0 0.0
        %366 = vmatpush1.msra.mxu0 0.0
        %367 = vmatprep.subr.mxu0 0.0
        %368 = vmatpush1.msra.mxu0 0.0
        %369 = vmatprep.subr.mxu0 0.0
        %370 = vmatpush1.msra.mxu0 0.0
        %371 = vmatprep.subr.mxu0 0.0
        %372 = vmatpush1.msra.mxu0 0.0
        %373 = vmatprep.subr.mxu0 0.0
        %374 = vmatpush1.msra.mxu0 0.0
        %375 = vmatprep.subr.mxu0 0.0
        %376 = vmatpush1.msra.mxu0 0.0
        %377 = vmatprep.subr.mxu0 0.0
        %378 = vmatpush1.msra.mxu0 0.0
        %379 = vmatprep.subr.mxu0 0.0
        %380 = vmatpush1.msra.mxu0 0.0
        %381 = vmatprep.subr.mxu0 0.0
        %382 = vmatpush1.msra.mxu0 0.0
        %383 = vmatprep.subr.mxu0 0.0
        %384 = vmatpush1.msra.mxu0 0.0
        %385 = vmatprep.subr.mxu0 0.0
        %386 = vmatpush1.msra.mxu0 0.0
        %387 = vmatprep.subr.mxu0 0.0
        %388 = vmatpush1.msra.mxu0 0.0
        %389 = vmatprep.subr.mxu0 0.0
        %390 = vmatpush1.msra.mxu0 0.0
        %391 = vmatprep.subr.mxu0 0.0
        %392 = vmatpush1.msra.mxu0 0.0
        %393 = vmatprep.subr.mxu0 0.0
        %394 = vmatpush1.msra.mxu0 0.0
        %395 = vmatprep.subr.mxu0 0.0
        %396 = vmatpush1.msra.mxu0 0.0
        %397 = vmatprep.subr.mxu0 0.0
        %398 = vmatpush1.msra.mxu0 0.0
        %399 = vmatprep.subr.mxu0 0.0
        %400 = vmatpush1.msra.mxu0 0.0
        %401 = vmatprep.subr.mxu0 0.0
        %402 = vmatpush1.msra.mxu0 0.0
        %403 = vmatprep.subr.mxu0 0.0
        %404 = vmatpush1.msra.mxu0 0.0
        %405 = vmatprep.subr.mxu0 0.0
        %406 = vmatpush1.msra.mxu0 0.0
        %407 = vmatprep.subr.mxu0 0.0
        %408 = vmatpush1.msra.mxu0 0.0
        %409 = vmatprep.subr.mxu0 0.0
        %410 = vmatpush1.msra.mxu0 0.0
        %411 = vmatprep.subr.mxu0 0.0
        %412 = vmatpush1.msra.mxu0 0.0
        %413 = vmatprep.subr.mxu0 0.0
        %414 = vmatpush1.msra.mxu0 0.0
        %415 = vmatprep.subr.mxu0 0.0
        %416 = vmatpush1.msra.mxu0 0.0
        %417 = vmatprep.subr.mxu0 0.0
        %418 = vmatpush1.msra.mxu0 0.0
        %419 = vmatprep.subr.mxu0 0.0
        %420 = vmatpush1.msra.mxu0 0.0
        %421 = vmatprep.subr.mxu0 0.0
        %422 = vmatpush1.msra.mxu0 0.0
        %423 = vmatprep.subr.mxu0 0.0
        %424 = vmatpush1.msra.mxu0 0.0
        %425 = vmatprep.mubr.f32.mxu0 0.0
        %426 = vmatmul.mubr.f32.gmra.mrb[0].mxu0 %v350
        %v427 = vpop.f32.mrb[0].mxu0
        %v428 = vadd.f32 %v331, %v427
        %v429 = vpop.f32.mrb[0].mxu0
        %430 = vmatprep.mubr.f32.mxu0 0.0
        %431 = vmatmul.mubr.f32.gmra.mrb[0].mxu0 %v353
        %v432 = vpop.f32.mrb[0].mxu0
        %v433 = vadd.f32 %v336, %v432
        %v434 = vpop.f32.mrb[0].mxu0
        %435 = vmatprep.mubr.f32.mxu0 0.0
        %436 = vmatmul.mubr.f32.gmra.mrb[0].mxu0 %v356
        %v437 = vpop.f32.mrb[0].mxu0
        %v438 = vadd.f32 %v341, %v437
        %v439 = vpop.f32.mrb[0].mxu0
        %440 = vmatprep.mubr.f32.mxu0 0.0
        %441 = vmatmul.mubr.f32.gmra.mrb[0].mxu0 %v359
        %v442 = vpop.f32.mrb[0].mxu0
        %v443 = vadd.f32 %v346, %v442
        %v444 = vpop.f32.mrb[0].mxu0
        %445 = vdwg.mxu0
        %v446 = vmax.f32 %v428, 0.0
        %v447 = vmax.f32 %v433, 0.0
        %v448 = vmax.f32 %v438, 0.0
        %v449 = vmax.f32 %v443, 0.0
        %v450 = vlaneseq
        %v451 = vand.u32 %v450, 127
        %vm452 = vcmp.lt.s32.totalorder %v451, 0
        %v453 = vsub.s32 0, %v451
        %v454 = vsel %vm452, %v453, %v451
        %v455 = vshrl.u32 %v454, 7
        %v456 = vand.u32 %v454, 127
        %v457 = vsub.s32 0, %v456
        %v458 = vsel %vm452, %v457, %v456
        %vm459 = vcmp.ne.s32.totalorder %v458, 0
        %vm460 = vcmp.lt.s32.totalorder %v458, 0
        %vm461 = vmand %vm460, %vm459
        %v462 = vadd.s32 %v458, 128
        %v463 = vsel %vm461, %v462, %v458
        %vm464 = vcmp.eq.s32.totalorder %v463, 0
        %465 = vrot.lane.b32.xlu0 %v446, 1
        %v466 = vpop.permute.xlu0 %465
        %467 = vrot.lane.b32.xlu0 %v447, 1
        %v468 = vpop.permute.xlu0 %467
        %469 = vrot.lane.b32.xlu0 %v448, 1
        %v470 = vpop.permute.xlu0 %469
        %471 = vrot.lane.b32.xlu0 %v449, 1
        %v472 = vpop.permute.xlu0 %471
        %v473 = vsel %vm464, 0.0, %v466
        %v474 = vsel %vm464, 0.0, %v468
        %v475 = vsel %vm464, 0.0, %v470
        %v476 = vsel %vm464, 0.0, %v472
        %vm477 = vcmp.eq.s32.totalorder %v463, 127
        %478 = vrot.lane.b32.xlu0 %v446, 127
        %v479 = vpop.permute.xlu0 %478
        %480 = vrot.lane.b32.xlu0 %v447, 127
        %v481 = vpop.permute.xlu0 %480
        %482 = vrot.lane.b32.xlu0 %v448, 127
        %v483 = vpop.permute.xlu0 %482
        %484 = vrot.lane.b32.xlu0 %v449, 127
        %v485 = vpop.permute.xlu0 %484
        %v486 = vsel %vm477, 0.0, %v479
        %v487 = vsel %vm477, 0.0, %v481
        %v488 = vsel %vm477, 0.0, %v483
        %v489 = vsel %vm477, 0.0, %v485
        %v490 = vld [vmem:[%s5] sm:$0xff]
        %vm491 = vcmask 785408
        %v493 = vsel %vm491, %v490, 0
        %495 = vmatprep.subr.mxu0 0.0
        %496 = vmatpush1.msra.mxu0 %v473
        %497 = vmatprep.subr.mxu0 0.0
        %498 = vmatpush1.msra.mxu0 %v474
        %499 = vmatprep.subr.mxu0 0.0
        %500 = vmatpush1.msra.mxu0 %v475
        %501 = vmatprep.subr.mxu0 0.0
        %502 = vmatpush1.msra.mxu0 %v476
        %503 = vmatprep.subr.mxu0 0.0
        %504 = vmatpush1.msra.mxu0 %v446
        %505 = vmatprep.subr.mxu0 0.0
        %506 = vmatpush1.msra.mxu0 %v447
        %507 = vmatprep.subr.mxu0 0.0
        %508 = vmatpush1.msra.mxu0 %v448
        %509 = vmatprep.subr.mxu0 0.0
        %510 = vmatpush1.msra.mxu0 %v449
        %511 = vmatprep.subr.mxu0 0.0
        %512 = vmatpush1.msra.mxu0 %v486
        %513 = vmatprep.subr.mxu0 0.0
        %514 = vmatpush1.msra.mxu0 %v487
        %515 = vmatprep.subr.mxu0 0.0
        %516 = vmatpush1.msra.mxu0 %v488
        %517 = vmatprep.subr.mxu0 0.0
        %518 = vmatpush1.msra.mxu0 %v489
        %519 = vmatprep.subr.mxu0 0.0
        %520 = vmatpush1.msra.mxu0 0.0
        %521 = vmatprep.subr.mxu0 0.0
        %522 = vmatpush1.msra.mxu0 0.0
        %523 = vmatprep.subr.mxu0 0.0
        %524 = vmatpush1.msra.mxu0 0.0
        %525 = vmatprep.subr.mxu0 0.0
        %526 = vmatpush1.msra.mxu0 0.0
        %527 = vmatprep.subr.mxu0 0.0
        %528 = vmatpush1.msra.mxu0 0.0
        %529 = vmatprep.subr.mxu0 0.0
        %530 = vmatpush1.msra.mxu0 0.0
        %531 = vmatprep.subr.mxu0 0.0
        %532 = vmatpush1.msra.mxu0 0.0
        %533 = vmatprep.subr.mxu0 0.0
        %534 = vmatpush1.msra.mxu0 0.0
        %535 = vmatprep.subr.mxu0 0.0
        %536 = vmatpush1.msra.mxu0 0.0
        %537 = vmatprep.subr.mxu0 0.0
        %538 = vmatpush1.msra.mxu0 0.0
        %539 = vmatprep.subr.mxu0 0.0
        %540 = vmatpush1.msra.mxu0 0.0
        %541 = vmatprep.subr.mxu0 0.0
        %542 = vmatpush1.msra.mxu0 0.0
        %543 = vmatprep.subr.mxu0 0.0
        %544 = vmatpush1.msra.mxu0 0.0
        %545 = vmatprep.subr.mxu0 0.0
        %546 = vmatpush1.msra.mxu0 0.0
        %547 = vmatprep.subr.mxu0 0.0
        %548 = vmatpush1.msra.mxu0 0.0
        %549 = vmatprep.subr.mxu0 0.0
        %550 = vmatpush1.msra.mxu0 0.0
        %551 = vmatprep.subr.mxu0 0.0
        %552 = vmatpush1.msra.mxu0 0.0
        %553 = vmatprep.subr.mxu0 0.0
        %554 = vmatpush1.msra.mxu0 0.0
        %555 = vmatprep.subr.mxu0 0.0
        %556 = vmatpush1.msra.mxu0 0.0
        %557 = vmatprep.subr.mxu0 0.0
        %558 = vmatpush1.msra.mxu0 0.0
        %559 = vmatprep.mubr.f32.mxu0 0.0
        %560 = vmatmul.mubr.f32.gmra.mrb[0].mxu0 %v493
        %v561 = vpop.f32.mrb[0].mxu0
        %v562 = vadd.f32 0.0, %v561
        %v563 = vpop.f32.mrb[0].mxu0
        %564 = vdwg.mxu0
        %565 = vst [vmem:[%s287] sm:$0xff] %v562
        %s566 = sand.u32 %s159, 1
        %s567 = scalar_lea.sflag [#allocation4], %s566
        %s568 = sand.u32 %s159, 1
        %s569 = smul.addr %s568, 8
        %s570 = scalar_lea.vmem [#allocation3], %s569
        // Predicated region
        $region83: #{tpu_custom_call.1} parent=77 // pred_check
          %p571 = pneg %p169
        $region84: #{tpu_custom_call.1} parent=77 // pred_check_branch
          %573 = sbr.rel (%p571) target = $region86
        $region85: #{tpu_custom_call.1} parent=77 // pred_region
          %s575 = ssub.s32 128, 128
          %576 = vsyncadd %s567, %s575
          %s577 = smul.addr %s20, 128
          %s578 = scalar_lea.hbm %s6, %s577
          %s580 = sshll.u32 %s570, 4
          %s581 = int_to_ptr.vmem [resolvable:$true] %s580
          %583 = dma.vmem_to_hbm [thread:$0]  %s581, 128, %s578, %s567
        $region86: #{tpu_custom_call.1} parent=77 // pred_fallthru
          _
      $region78: #{tpu_custom_call.1} parent=5 // pred_fallthru
        _
      %p584 = scmp.le.s32.totalorder 2, %s15
      // Predicated region
      $region87: #{tpu_custom_call.1} parent=5 // pred_check
        %p585 = pneg %p584
      $region88: #{tpu_custom_call.1} parent=5 // pred_check_branch
        %587 = sbr.rel (%p585) target = $region90
      $region89: #{tpu_custom_call.1} parent=5 // pred_region
        %s588 = ssub.s32 %s15, 2
        // Predicated region
        $region91: #{tpu_custom_call.1} parent=89 // pred_check
          %p589 = pneg %p175
        $region92: #{tpu_custom_call.1} parent=89 // pred_check_branch
          %591 = sbr.rel (%p589) target = $region94
        $region93: #{tpu_custom_call.1} parent=89 // pred_region
          %s592 = sand.u32 %s160, 1
          %s593 = scalar_lea.sflag [#allocation4], %s592
          %s594 = sand.u32 %s160, 1
          %s595 = smul.addr %s594, 8
          %s596 = scalar_lea.vmem [#allocation3], %s595
          %597 = dma.done %s593, 128
        $region94: #{tpu_custom_call.1} parent=89 // pred_fallthru
          _
      $region90: #{tpu_custom_call.1} parent=5 // pred_fallthru
        _
    $region6: #{tpu_custom_call.1} parent=1 // loop_footer
      %s19 = sadd.s32 1, %s15
    $region7: #{tpu_custom_call.1} parent=1 // loop_footer_branch
      %14 = sbr.rel target = $region3
    $region8: #{tpu_custom_call.1} parent=1 // loop_exit
      _
    %598 = vsyncpa [#allocation4], 1
    %s599 = scalar_lea.sflag [#allocation4], 1
    %600 = vsyncpa %s599, 1

</llo_original>
